<compile_context>
chip_gen: v5e
topology: v5e:2x2
jax: 0.10.0
libtpu: 0.0.40
codegen_flags: <defaults>
</compile_context>

<pallas_src>
import functools

import jax
import jax.numpy as jnp
from jax import lax
from jax.experimental import pallas as pl
from jax.experimental.pallas import tpu as pltpu


def _leaky_relu(x, slope=0.01):
    return jnp.where(x > 0, x, slope * x)


# ----------------------------------------------------------------------------
# Kernel 1: streamed spatial-sum reduction (pooling numerator)
# ----------------------------------------------------------------------------
def pool_sum_kernel(feats_ref, psum_ref, *, group):
    k = pl.program_id(1)                       # reduction axis ("arbitrary")

    @pl.when(k == 0)
    def _():
        psum_ref[...] = jnp.zeros_like(psum_ref)

    ts = feats_ref.shape[1]
    if group == 8:
        # Deferred cross-sublane reduce: accumulate 8-row groups with pure
        # vreg-aligned VPU adds into a (B, 8, D) carry.  Native-dtype loads,
        # f32 accumulation (astype is a no-op for f32 feats).
        def body(g, carry):
            start = pl.multiple_of(g * 8, 8)
            return carry + feats_ref[:, pl.ds(start, 8), :].astype(jnp.float32)

        part = lax.fori_loop(1, ts // 8, body,
                             feats_ref[:, 0:8, :].astype(jnp.float32))
    else:
        # Fallback for odd spatial extents (single full-extent tile).
        part = jnp.sum(feats_ref[...].astype(jnp.float32), axis=1,
                       keepdims=True)

    psum_ref[...] += part[None]


# ----------------------------------------------------------------------------
# Kernel 2: finalize (mean) + 3-layer MLP, single invocation
# ----------------------------------------------------------------------------
def mlp_kernel(psum_ref, bbox_ref, w1a_ref, w1b_ref, b1_ref, w2_ref, b2_ref,
               wp_ref, bp_ref, out_ref, *, inv_s):
    # Combine per-core partials, then the single deferred 8-row reduce; mean.
    pooled = psum_ref[...].sum(axis=0).sum(axis=1) * inv_s          # (B, D) f32
    pooled = pooled.astype(w1a_ref.dtype)                           # bf16 for MXU
    bbox = bbox_ref[...].astype(w1b_ref.dtype)

    # fc1 on concat([pooled, bbox_emb]) as a split matmul + LeakyReLU
    h1 = (jnp.dot(pooled, w1a_ref[...], preferred_element_type=jnp.float32)
          + jnp.dot(bbox, w1b_ref[...], preferred_element_type=jnp.float32)
          + b1_ref[...])
    h1 = _leaky_relu(h1)

    # fc2 + LeakyReLU
    h2 = _leaky_relu(
        jnp.dot(h1.astype(w2_ref.dtype), w2_ref[...],
                preferred_element_type=jnp.float32) + b2_ref[...])

    # fc_p (bf16 operands, f32 accumulation), lane-dense padded output
    out_ref[...] = (jnp.dot(h2.astype(wp_ref.dtype), wp_ref[...],
                            preferred_element_type=jnp.float32) + bp_ref[...])


# ----------------------------------------------------------------------------
# Wrapper
# ----------------------------------------------------------------------------
def _choose_spatial_tile(s, bytes_per_row, budget_bytes):
    """Largest multiple-of-8 divisor of S whose double-buffered feats block
    fits the VMEM budget; keeps a few tiles for pipelining / the dual-TC
    split; falls back to a single full-extent block."""
    cap = budget_bytes // max(1, 2 * bytes_per_row)    # rows per tile (2 bufs)
    cap = min(cap, 1024)                               # roofline plateau
    cap = min(cap, max(8, s // 4))                     # leave >=4 tiles if possible
    best = 0
    t = 8
    while t <= min(s, cap):
        if s % t == 0:
            best = t
        t += 8
    return best if best else s


def prepare_pose_head_params(params):
    """One-time param prep: bf16 weight casts + fc_p zero-padding to 128 cols
    (hoisted out of the per-call path)."""
    out_dim = params["wp"].shape[1]                    # rot_dim + 3
    out_pad = 128 * pl.cdiv(out_dim, 128)
    wp = jnp.zeros((params["wp"].shape[0], out_pad), jnp.bfloat16)
    wp = wp.at[:, :out_dim].set(params["wp"].astype(jnp.bfloat16))
    bp = jnp.zeros((1, out_pad), jnp.float32)
    bp = bp.at[:, :out_dim].set(params["bp"].reshape(1, -1).astype(jnp.float32))
    return {
        "w1a": params["w1a"].astype(jnp.bfloat16),
        "w1b": params["w1b"].astype(jnp.bfloat16),
        "b1": params["b1"].reshape(1, -1).astype(jnp.float32),
        "w2": params["w2"].astype(jnp.bfloat16),
        "b2": params["b2"].reshape(1, -1).astype(jnp.float32),
        "wp": wp,
        "bp": bp,
        "out_dim": int(out_dim),
        "out_pad": int(out_pad),
    }


def pose_regression_cat_head(feats, bbox_emb, prep):
    """feats: (B, S, D) backbone features (native dtype, typically f32);
    bbox_emb: (B, E); prep: prepare_pose_head_params(...).  Returns (r, t)."""
    B, S, D = feats.shape
    E = bbox_emb.shape[-1]
    H1 = prep["w1a"].shape[1]
    H2 = prep["w2"].shape[1]
    out_dim, out_pad = prep["out_dim"], prep["out_pad"]

    # ---- VMEM-budget-driven spatial tile ------------------------------------
    try:
        vmem_cap = int(pltpu.get_tpu_info().vmem_capacity_bytes)
    except Exception:
        vmem_cap = 64 << 20                    # conservative (v7x per-core)
    feats_budget = vmem_cap // 4               # ~16 MiB v7x, ~32 MiB v5e/v6e
    bytes_per_row = B * D * feats.dtype.itemsize
    ts = _choose_spatial_tile(S, bytes_per_row, feats_budget)
    n_tiles = S // ts
    group = 8 if ts % 8 == 0 else 1
    # Split the spatial axis across both TensorCores on v7x (no-op on 1-TC).
    n_split = 2 if (n_tiles >= 2 and n_tiles % 2 == 0) else 1
    tiles_per_split = n_tiles // n_split

    # ---- call 1: streamed pooling reduction ---------------------------------
    feats_block_bytes = B * ts * D * feats.dtype.itemsize
    psum_block_bytes = B * group * D * 4
    pool_vmem = int(min(max(2 * feats_block_bytes + 2 * psum_block_bytes
                            + (4 << 20), 16 << 20),
                        (vmem_cap * 3) // 4))
    pool_cost = pl.CostEstimate(
        flops=int(B) * int(S) * int(D), transcendentals=0,
        bytes_accessed=int(feats.size) * feats.dtype.itemsize
        + int(n_split * B * group * D) * 4)

    psum = pl.pallas_call(
        functools.partial(pool_sum_kernel, group=group),
        out_shape=jax.ShapeDtypeStruct((n_split, B, group, D), jnp.float32),
        grid=(n_split, tiles_per_split),
        in_specs=[pl.BlockSpec(
            (B, ts, D), lambda c, k: (0, c * tiles_per_split + k, 0))],
        out_specs=pl.BlockSpec((1, B, group, D), lambda c, k: (c, 0, 0, 0)),
        compiler_params=pltpu.CompilerParams(
            dimension_semantics=("parallel", "arbitrary"),
            vmem_limit_bytes=pool_vmem),
        cost_estimate=pool_cost,
    )(feats)

    # ---- call 2: mean + MLP (single step, everything resident in VMEM) ------
    operands = (psum, bbox_emb, prep["w1a"], prep["w1b"], prep["b1"],
                prep["w2"], prep["b2"], prep["wp"], prep["bp"])
    mlp_flops = 2 * B * (D * H1 + E * H1 + H1 * H2 + H2 * out_pad)
    mlp_bytes = (sum(int(a.size) * a.dtype.itemsize for a in operands)
                 + B * out_pad * 4)
    out = pl.pallas_call(
        functools.partial(mlp_kernel, inv_s=1.0 / S),
        out_shape=jax.ShapeDtypeStruct((B, out_pad), jnp.float32),
        cost_estimate=pl.CostEstimate(flops=int(mlp_flops), transcendentals=0,
                                      bytes_accessed=int(mlp_bytes)),
    )(*operands)

    p = out[:, :out_dim]
    t = p[:, :3]          # translation = first 3  (x[:, :3] in PyTorch)
    r = p[:, 3:]          # rotation    = remaining rot_dim
    return r, t


def bounding_box_embedding_combined(bbox, table):
    # TODO(synk): BoundingBoxEmbeddingCombined's source is not in the snippet;
    # modeled as a shared (bbox_emb_inp_size, E) embedding table looked up for
    # each of the 4 bbox coordinates and summed ("combined").
    idx = jnp.clip(bbox.astype(jnp.int32), 0, table.shape[0] - 1)    # (B, 4)
    return jnp.take(table, idx, axis=0).sum(axis=1)                  # (B, E)


def ref_forward(feats, bbox_emb, p):
    """Pure-JAX f32 reference matching the module forward semantics."""
    pooled = feats.mean(axis=1)
    x = jnp.concatenate([pooled, bbox_emb], axis=-1)
    w1 = jnp.concatenate([p["w1a"], p["w1b"]], axis=0)
    h1_pre = x @ w1 + p["b1"]
    h1 = jnp.where(h1_pre > 0, h1_pre, 0.01 * h1_pre)
    h2_pre = h1 @ p["w2"] + p["b2"]
    h2 = jnp.where(h2_pre > 0, h2_pre, 0.01 * h2_pre)
    out = h2 @ p["wp"] + p["bp"]
    return out[:, 3:], out[:, :3]


if __name__ == "__main__":
    # Small, module-consistent config.  S=1024 so the kernel runs several grid
    # steps through the accumulator path and the dual-TC split engages
    # (ts=256 -> grid=(2, 2)).  NOTE: for real efficiency batch more rows along
    # B (target ~128-256) before calling the head so the MXU isn't at M=2.
    B, H, W = 2, 32, 32
    d_model = 256              # backbone feature dim (module default 768, shrunk)
    bbox_emb_dim = 128
    bbox_emb_inp_size = 700
    rot_dim = 6
    hidden1, hidden2 = 1024, 512

    key = jax.random.PRNGKey(0)
    ks = jax.random.split(key, 10)

    # "backbone" output (NHWC, 4-D branch).  The 4-D branch is interpreted as
    # the intended spatial flatten to (B, H*W, D) -> per-channel spatial mean.
    backbone_feats = jax.random.normal(ks[0], (B, H, W, d_model), jnp.float32)
    feats = backbone_feats.reshape(B, H * W, d_model)              # (B, S, D)

    # bbox input (B, 4) integer-ish coords in [0, bbox_emb_inp_size)
    bbox = jax.random.randint(ks[1], (B, 4), 0, bbox_emb_inp_size).astype(jnp.float32)
    bbox_table = 0.02 * jax.random.normal(ks[2], (bbox_emb_inp_size, bbox_emb_dim),
                                          jnp.float32)
    bbox_emb = bounding_box_embedding_combined(bbox, bbox_table)   # (B, E)

    # Deterministic synthetic head parameters (stored as (in, out) for x @ W)
    params = {
        "w1a": 0.02 * jax.random.normal(ks[3], (d_model, hidden1), jnp.float32),
        "w1b": 0.02 * jax.random.normal(ks[4], (bbox_emb_dim, hidden1), jnp.float32),
        "b1":  0.01 * jax.random.normal(ks[5], (1, hidden1), jnp.float32),
        "w2":  0.02 * jax.random.normal(ks[6], (hidden1, hidden2), jnp.float32),
        "b2":  0.01 * jax.random.normal(ks[7], (1, hidden2), jnp.float32),
        "wp":  0.02 * jax.random.normal(ks[8], (hidden2, rot_dim + 3), jnp.float32),
        "bp":  0.01 * jax.random.normal(ks[9], (1, rot_dim + 3), jnp.float32),
    }

    prep = prepare_pose_head_params(params)     # one-time casts / padding
    r, t = pose_regression_cat_head(feats, bbox_emb, prep)
    jax.block_until_ready((r, t))

    r_ref, t_ref = ref_forward(feats, bbox_emb, params)
    assert r.shape == (B, rot_dim) and t.shape == (B, 3)
    # f32 pooling + bf16 matmul operands vs f32 reference: moderate tolerances
    assert jnp.allclose(r, r_ref, rtol=3e-2, atol=1e-3), \
        f"r mismatch: {jnp.max(jnp.abs(r - r_ref))}"
    assert jnp.allclose(t, t_ref, rtol=3e-2, atol=1e-3), \
        f"t mismatch: {jnp.max(jnp.abs(t - t_ref))}"
    print("KERNEL_OK")
</pallas_src>

<mosaic_0001>
module attributes {stable_mosaic.version = 11 : i64} {
  func.func @pool_sum_kernel(%arg0: i32, %arg1: i32, %arg2: memref<2x256x256xf32, #tpu.memory_space<vmem>>, %arg3: memref<1x2x8x256xf32, #tpu.memory_space<vmem>>) attributes {dimension_semantics = [#tpu.dimension_semantics<parallel>, #tpu.dimension_semantics<arbitrary>], iteration_bounds = array<i64: 2, 2>, scalar_prefetch = 0 : i64, scratch_operands = 0 : i64, tpu.core_type = #tpu.core_type<tc>, window_params = [{transform_indices = @transform_0, window_bounds = array<i64: 2, 256, 256>}, {transform_indices = @transform_1, window_bounds = array<i64: 1, 2, 8, 256>}]} {
    %c0_i32 = arith.constant 0 : i32
    %0 = arith.cmpi eq, %arg1, %c0_i32 : i32
    %1 = arith.extui %0 : i1 to i32
    %c0_i32_0 = arith.constant 0 : i32
    %2 = arith.cmpi ne, %1, %c0_i32_0 : i32
    scf.if %2 {
      %cst = arith.constant 0.000000e+00 : f32
      %10 = vector.broadcast %cst : f32 to vector<1x2x8x256xf32>
      %c0_13 = arith.constant 0 : index
      %c0_14 = arith.constant 0 : index
      %c0_15 = arith.constant 0 : index
      %c0_16 = arith.constant 0 : index
      %11 = vector.load %arg3[%c0_13, %c0_14, %c0_15, %c0_16] : memref<1x2x8x256xf32, #tpu.memory_space<vmem>>, vector<1x2x8x256xf32>
      tpu.vector_store %arg3[%c0_13, %c0_14, %c0_15, %c0_16], %10 {strides = array<i32>} : memref<1x2x8x256xf32, #tpu.memory_space<vmem>>, vector<1x2x8x256xf32>,
    } else {
    }
    %c0 = arith.constant 0 : index
    %c0_1 = arith.constant 0 : index
    %c0_2 = arith.constant 0 : index
    %3 = vector.load %arg2[%c0, %c0_1, %c0_2] : memref<2x256x256xf32, #tpu.memory_space<vmem>>, vector<2x8x256xf32>
    %c1_i32 = arith.constant 1 : i32
    %c31_i32 = arith.constant 31 : i32
    %4 = arith.addi %c1_i32, %c31_i32 : i32
    %c1_i32_3 = arith.constant 1 : i32
    %5 = scf.for %arg4 = %c1_i32 to %4 step %c1_i32_3 iter_args(%arg5 = %3) -> (vector<2x8x256xf32>)  : i32 {
      %c8_i32 = arith.constant 8 : i32
      %10 = arith.muli %arg4, %c8_i32 : i32
      %11 = tpu.assume_multiple %10, 8 : i32
      %c0_13 = arith.constant 0 : index
      %12 = arith.index_cast %11 : i32 to index
      %c0_14 = arith.constant 0 : index
      %13 = vector.load %arg2[%c0_13, %12, %c0_14] : memref<2x256x256xf32, #tpu.memory_space<vmem>>, vector<2x8x256xf32>
      %14 = arith.addf %arg5, %13 : vector<2x8x256xf32>
      scf.yield %14 : vector<2x8x256xf32>
    }
    %c31_i32_4 = arith.constant 31 : i32
    %c0_5 = arith.constant 0 : index
    %c0_6 = arith.constant 0 : index
    %c0_7 = arith.constant 0 : index
    %c0_8 = arith.constant 0 : index
    %6 = vector.load %arg3[%c0_5, %c0_6, %c0_7, %c0_8] : memref<1x2x8x256xf32, #tpu.memory_space<vmem>>, vector<1x2x8x256xf32>
    %7 = vector.shape_cast %5 : vector<2x8x256xf32> to vector<1x2x8x256xf32>
    %8 = arith.addf %6, %7 : vector<1x2x8x256xf32>
    %c0_9 = arith.constant 0 : index
    %c0_10 = arith.constant 0 : index
    %c0_11 = arith.constant 0 : index
    %c0_12 = arith.constant 0 : index
    %9 = vector.load %arg3[%c0_9, %c0_10, %c0_11, %c0_12] : memref<1x2x8x256xf32, #tpu.memory_space<vmem>>, vector<1x2x8x256xf32>
    tpu.vector_store %arg3[%c0_9, %c0_10, %c0_11, %c0_12], %8 {strides = array<i32>} : memref<1x2x8x256xf32, #tpu.memory_space<vmem>>, vector<1x2x8x256xf32>,
    return
  }
  func.func @transform_0(%arg0: i32, %arg1: i32) -> (i32, i32, i32) {
    %c2_i32 = arith.constant 2 : i32
    %0 = arith.muli %arg0, %c2_i32 : i32
    %1 = arith.addi %0, %arg1 : i32
    %c0_i32 = arith.constant 0 : i32
    %c0_i32_0 = arith.constant 0 : i32
    %c0_i32_1 = arith.constant 0 : i32
    return %c0_i32, %1, %c0_i32_0 : i32, i32, i32
  }
  func.func @transform_1(%arg0: i32, %arg1: i32) -> (i32, i32, i32, i32) {
    %c0_i32 = arith.constant 0 : i32
    %c0_i32_0 = arith.constant 0 : i32
    %c0_i32_1 = arith.constant 0 : i32
    %c0_i32_2 = arith.constant 0 : i32
    return %arg0, %c0_i32, %c0_i32_0, %c0_i32_1 : i32, i32, i32, i32
  }
}

</mosaic_0001>

<llo_original>
// kernel: tpu_custom_call.1
$region0: #{tpu_custom_call.1}
  #allocation0 [shape = 'u32[]', space=smem, size = 0x4, offset = 0x4, fixed_abs, tag = 'smem constant byte address 0x4 - core index']
  #allocation1 [shape = 'u32[72,128]{1,0:T(1,128)}', space=vmem, size = 0x9000, scoped, tag = 'internal scratch']
  #allocation6 [shape = 's32[]', space=sflag, size = 0x4, offset = 0, fixed_abs, tag = 'sflag constant byte address 0x0 - dummy sync flag']
  %s0 = inlined_call_operand.hbm [shape: f32[2,1024,256], index: 0, kind: input, shape index: {}]
  %s1 = inlined_call_operand.hbm [shape: f32[2,2,8,256], index: 1, kind: output, shape index: {}]
  %s2 = sld [smem:[#allocation0]]
  $region52: #{tpu_custom_call.1} parent=0
    _
  %s4 = ssub.s32 1, %s2
  %s5 = scalar_select 0, %s4, %s2
  $region1: #{tpu_custom_call.1} parent=0
    #allocation2 [shape = 'u8[1048576]{0}', space=vmem, size = 0x100000, scoped, tag = 'input window, operand 0']
    #allocation3 [shape = 's32[2]{0}', space=sflag, size = 0x8, scoped, tag = 'scoped memory for tpu_custom_call.1']
    #allocation4 [shape = 's32[2]{0}', space=sflag, size = 0x8, scoped, tag = 'scoped memory for tpu_custom_call.1']
    #allocation5 [shape = 'u8[32768]{0}', space=vmem, size = 0x8000, scoped, tag = 'output window, operand 0']
    %6 = vsyncpa [#allocation3], 0
    %s7 = scalar_lea.sflag [#allocation3], 1
    %8 = vsyncpa %s7, 0
    %9 = vsyncpa [#allocation4], 0
    %s10 = scalar_lea.sflag [#allocation4], 1
    %11 = vsyncpa %s10, 0
    loop: start=0, step=1, limit=6
    $region2: #{tpu_custom_call.1} parent=1 // loop_pre_header
      _
    $region3: #{tpu_custom_call.1} parent=1 // loop_header
      %s13 = sphi 0, %s17
      %p14 = scmp.ge.s32.totalorder %s13, 6
      %s20 = sphi 0, %s32
      %s21 = sphi 0, %s28
      %s22 = sphi 0, %s20
      %s23 = sphi 0, %s21
      %s24 = sphi 0, %s22
      %s25 = sphi 0, %s23
      %s39 = sphi 0, %s41
      %s42 = sphi 0, %s39
      %s43 = sphi 0, %s42
      %s59 = sphi 0, %s43
      %s65 = sphi 0, %s67
      %s68 = sphi 0, %s65
      %s69 = sphi 0, %s68
      %s85 = sphi 0, %s69
    $region4: #{tpu_custom_call.1} parent=1 // loop_header_branch
      %16 = sbr.rel (%p14) target = $region8
    $region5: #{tpu_custom_call.1} parent=1 // loop_body
      %s18 = ssub.s32 %s13, 1
      %s19 = ssub.s32 %s13, 2
      %s26 = sadd.s32 1, %s21
      %p27 = scmp.ge.s32.totalorder %s26, 2
      %s28 = scalar_select %p27, 0, %s26
      %s29 = sadd.s32 1, %s20
      %s30 = scalar_select %p27, %s29, %s20
      %p31 = scmp.ge.s32.totalorder %s30, 2
      %s32 = scalar_select %p31, 0, %s30
      %s33 = smul.u32 %s20, 2
      %s34 = sadd.s32 %s33, %s21
      %s35 = smul.u32 %s32, 2
      %s36 = sadd.s32 %s35, %s28
      %s37 = ssub.s32 %s34, %s36
      %p38 = scmp.eq.s32.totalorder %s37, 0
      %s40 = sadd.s32 %s39, 1
      %s41 = scalar_select %p38, %s39, %s40
      %p44 = pneg %p38
      %p45 = scmp.eq.s32.totalorder %s13, 3
      %p46 = por %p44, %p45
      %p47 = scmp.ne.s32.totalorder %s39, %s42
      %p48 = scmp.eq.s32.totalorder %s13, 0
      %p49 = por %p47, %p48
      %p50 = scmp.ne.s32.totalorder %s39, %s42
      %p51 = scmp.eq.s32.totalorder %s18, 3
      %p52 = por %p50, %p51
      %p53 = scmp.ne.s32.totalorder %s42, %s43
      %p54 = scmp.eq.s32.totalorder %s18, 0
      %p55 = por %p53, %p54
      %p56 = scmp.ne.s32.totalorder %s42, %s43
      %p57 = scmp.eq.s32.totalorder %s19, 3
      %p58 = por %p56, %p57
      %p60 = scmp.ne.s32.totalorder %s43, %s59
      %p61 = scmp.eq.s32.totalorder %s19, 0
      %p62 = por %p60, %p61
      %s63 = ssub.s32 %s20, %s32
      %p64 = scmp.eq.s32.totalorder %s63, 0
      %s66 = sadd.s32 %s65, 1
      %s67 = scalar_select %p64, %s65, %s66
      %p70 = pneg %p64
      %p71 = scmp.eq.s32.totalorder %s13, 3
      %p72 = por %p70, %p71
      %p73 = scmp.ne.s32.totalorder %s65, %s68
      %p74 = scmp.eq.s32.totalorder %s13, 0
      %p75 = por %p73, %p74
      %p76 = scmp.ne.s32.totalorder %s65, %s68
      %p77 = scmp.eq.s32.totalorder %s18, 3
      %p78 = por %p76, %p77
      %p79 = scmp.ne.s32.totalorder %s68, %s69
      %p80 = scmp.eq.s32.totalorder %s18, 0
      %p81 = por %p79, %p80
      %p82 = scmp.ne.s32.totalorder %s68, %s69
      %p83 = scmp.eq.s32.totalorder %s19, 3
      %p84 = por %p82, %p83
      %p86 = scmp.ne.s32.totalorder %s69, %s85
      %p87 = scmp.eq.s32.totalorder %s19, 0
      %p88 = por %p86, %p87
      %p89 = scmp.le.s32.totalorder 1, %s13
      %p90 = scmp.lt.s32.totalorder %s13, 5
      %p91 = pnand %p89, %p90
      %p92 = pneg %p91
      // Predicated region
      $region9: #{tpu_custom_call.1} parent=5 // pred_check
        _
      $region10: #{tpu_custom_call.1} parent=5 // pred_check_branch
        %94 = sbr.rel (%p91) target = $region12
      $region11: #{tpu_custom_call.1} parent=5 // pred_region
        %s95 = ssub.s32 %s13, 1
      $region12: #{tpu_custom_call.1} parent=5 // pred_fallthru
        _
      %p96 = scmp.lt.s32.totalorder %s13, 4
      // Predicated region
      $region13: #{tpu_custom_call.1} parent=5 // pred_check
        %p97 = pneg %p96
      $region14: #{tpu_custom_call.1} parent=5 // pred_check_branch
        %99 = sbr.rel (%p97) target = $region16
      $region15: #{tpu_custom_call.1} parent=5 // pred_region
        // Predicated region
        $region17: #{tpu_custom_call.1} parent=15 // pred_check
          %p100 = pneg %p49
        $region18: #{tpu_custom_call.1} parent=15 // pred_check_branch
          %102 = sbr.rel (%p100) target = $region20
        $region19: #{tpu_custom_call.1} parent=15 // pred_region
          #allocation7 [shape = 'u32[6]{0}', space=smem, size = 0x18, scoped, tag = 'DMA stride descriptor']
          %s103 = sand.u32 %s39, 1
          %s104 = scalar_lea.sflag [#allocation3], %s103
          %s105 = sand.u32 %s39, 1
          %s106 = smul.addr %s105, 1024
          %s107 = scalar_lea.vmem [#allocation2], %s106
          %s108 = smul.u32 %s20, 2
          %s109 = sadd.s32 %s108, %s21
          %s110 = smul.u32 32, %s109
          %112 = vsyncadd %s104, 0
          %s113 = smul.addr %s110, 2
          %s114 = smul.addr %s113, 8
          %s115 = scalar_lea.hbm %s0, %s114
          %s117 = sshll.u32 1, 14
          %s118 = sxor.u32 4294967295, %s117
          %s120 = sld [smem:[#allocation0]]
          %s121 = sadd.s32 2, %s120
          %s123 = sshll.u32 7, 26
          %s124 = sxor.u32 4294967295, %s123
          %s125 = sand.u32 0, %s124
          %s126 = sshll.u32 %s121, 26
          %s127 = sor.u32 %s125, %s126
          %s128 = sshll.u32 %s115, 4
          %s129 = int_to_ptr.hbm [resolvable:$true] %s128
          %s130 = sshll.u32 %s107, 4
          %s131 = int_to_ptr.vmem [resolvable:$true] %s130
          %137 = sst [smem:[#allocation7]] 32768
          %s138 = scalar_lea.smem [#allocation7], 1
          %139 = sst [smem:[%s138]] 8192
          %s140 = scalar_lea.smem [#allocation7], 2
          %141 = sst [smem:[%s140]] 32
          %s142 = scalar_lea.smem [#allocation7], 3
          %143 = sst [smem:[%s142]] 256
          %s144 = scalar_lea.smem [#allocation7], 4
          %145 = sst [smem:[%s144]] 256
          %s146 = scalar_lea.smem [#allocation7], 5
          %147 = sst [smem:[%s146]] 16
          %149 = dma.general %s129, 16384, %s131, %s104, [#allocation6], [#allocation7], %s127, 0
        $region20: #{tpu_custom_call.1} parent=15 // pred_fallthru
          _
      $region16: #{tpu_custom_call.1} parent=5 // pred_fallthru
        _
      %p150 = scmp.le.s32.totalorder 1, %s13
      %p151 = scmp.lt.s32.totalorder %s13, 5
      %p152 = pnand %p150, %p151
      %p153 = pneg %p152
      // Predicated region
      $region21: #{tpu_custom_call.1} parent=5 // pred_check
        _
      $region22: #{tpu_custom_call.1} parent=5 // pred_check_branch
        %155 = sbr.rel (%p152) target = $region24
      $region23: #{tpu_custom_call.1} parent=5 // pred_region
        %s156 = ssub.s32 %s13, 1
        %s157 = sand.u32 %s42, 1
        %s158 = scalar_lea.sflag [#allocation3], %s157
        %s159 = sand.u32 %s42, 1
        %s160 = smul.addr %s159, 1024
        %s161 = scalar_lea.vmem [#allocation2], %s160
        // Predicated region
        $region25: #{tpu_custom_call.1} parent=23 // pred_check
          %p162 = pneg %p55
        $region26: #{tpu_custom_call.1} parent=23 // pred_check_branch
          %164 = sbr.rel (%p162) target = $region28
        $region27: #{tpu_custom_call.1} parent=23 // pred_region
          %166 = dma.done %s158, 16384
        $region28: #{tpu_custom_call.1} parent=23 // pred_fallthru
          _
        %s167 = sand.u32 %s42, 1
        %s168 = scalar_lea.sflag [#allocation3], %s167
        %s169 = sand.u32 %s42, 1
        %s170 = smul.addr %s169, 1024
        %s171 = scalar_lea.vmem [#allocation2], %s170
        %p172 = pneg %p55
        %p173 = pneg %p52
        %p174 = pneg %p81
        %p175 = pneg %p78
        %s176 = sand.u32 %s68, 1
        %s177 = scalar_lea.sflag [#allocation4], %s176
        %s178 = sand.u32 %s68, 1
        %s179 = smul.addr %s178, 32
        %s180 = scalar_lea.vmem [#allocation5], %s179
        %s181 = smul.u32 %s22, 2
        %s182 = sadd.s32 %s181, %s23
        %s183 = smul.u32 32, %s182
        %p184 = scmp.eq.s32.totalorder %s23, 0
        // Predicated region
        $region29: #{tpu_custom_call.1} parent=23 // pred_check
          %p185 = pneg %p184
        $region30: #{tpu_custom_call.1} parent=23 // pred_check_branch
          %187 = sbr.rel (%p185) target = $region32
        $region31: #{tpu_custom_call.1} parent=23 // pred_region
          %188 = vst [vmem:[%s180] sm:$0xff] 0.0
          %189 = vst [vmem:[%s180 + $0x8] sm:$0xff] 0.0
          %190 = vst [vmem:[%s180 + $0x10] sm:$0xff] 0.0
          %191 = vst [vmem:[%s180 + $0x18] sm:$0xff] 0.0
        $region32: #{tpu_custom_call.1} parent=23 // pred_fallthru
          _
        %v192 = vld [vmem:[%s161] sm:$0xff]
        %v193 = vld [vmem:[%s161 + $0x8] sm:$0xff]
        %v194 = vld [vmem:[%s161 + $0x200] sm:$0xff]
        %v195 = vld [vmem:[%s161 + $0x208] sm:$0xff]
        loop: start=1, step=1, limit=32
        $region33: #{tpu_custom_call.1} parent=23 // loop_pre_header
          _
        $region34: #{tpu_custom_call.1} parent=23 // loop_header
          %s197 = sphi 1, %s201
          %p198 = scmp.ge.s32.totalorder %s197, 32
          %v202 = vphi %v192, %v216
          %v203 = vphi %v193, %v217
          %v204 = vphi %v194, %v218
          %v205 = vphi %v195, %v219
        $region35: #{tpu_custom_call.1} parent=23 // loop_header_branch
          %200 = sbr.rel (%p198) target = $region39
        $region36: #{tpu_custom_call.1} parent=23 // loop_body
          %s206 = smul.u32 %s197, 8
          %s207 = sshra.s32 %s206, 3
          %s208 = sand.u32 %s206, 7
          %s209 = smul.u32 %s207, 2
          %s210 = smul.addr %s209, 8
          %s211 = scalar_lea.vmem %s161, %s210 [#allocation2]
          %v212 = vld [vmem:[%s211] sm:$0xff]
          %v213 = vld [vmem:[%s211 + $0x8] sm:$0xff]
          %v214 = vld [vmem:[%s211 + $0x200] sm:$0xff]
          %v215 = vld [vmem:[%s211 + $0x208] sm:$0xff]
          %v216 = vadd.f32 %v202, %v212
          %v217 = vadd.f32 %v203, %v213
          %v218 = vadd.f32 %v204, %v214
          %v219 = vadd.f32 %v205, %v215
        $region37: #{tpu_custom_call.1} parent=23 // loop_footer
          %s201 = sadd.s32 1, %s197
        $region38: #{tpu_custom_call.1} parent=23 // loop_footer_branch
          %196 = sbr.rel target = $region34
        $region39: #{tpu_custom_call.1} parent=23 // loop_exit
          _
        %v220 = vld [vmem:[%s180] sm:$0xff]
        %v221 = vld [vmem:[%s180 + $0x8] sm:$0xff]
        %v222 = vld [vmem:[%s180 + $0x10] sm:$0xff]
        %v223 = vld [vmem:[%s180 + $0x18] sm:$0xff]
        %v224 = vadd.f32 %v220, %v202
        %v225 = vadd.f32 %v221, %v203
        %v226 = vadd.f32 %v222, %v204
        %v227 = vadd.f32 %v223, %v205
        %228 = vst [vmem:[%s180] sm:$0xff] %v224
        %229 = vst [vmem:[%s180 + $0x8] sm:$0xff] %v225
        %230 = vst [vmem:[%s180 + $0x10] sm:$0xff] %v226
        %231 = vst [vmem:[%s180 + $0x18] sm:$0xff] %v227
        %s232 = sand.u32 %s68, 1
        %s233 = scalar_lea.sflag [#allocation4], %s232
        %s234 = sand.u32 %s68, 1
        %s235 = smul.addr %s234, 32
        %s236 = scalar_lea.vmem [#allocation5], %s235
        // Predicated region
        $region40: #{tpu_custom_call.1} parent=23 // pred_check
          %p237 = pneg %p78
        $region41: #{tpu_custom_call.1} parent=23 // pred_check_branch
          %239 = sbr.rel (%p237) target = $region43
        $region42: #{tpu_custom_call.1} parent=23 // pred_region
          %241 = vsyncadd %s233, 0
          %s242 = smul.addr %s22, 4
          %s243 = smul.addr %s242, 8
          %s244 = scalar_lea.hbm %s1, %s243
          %s245 = sshll.u32 %s236, 4
          %s246 = int_to_ptr.vmem [resolvable:$true] %s245
          %s247 = sshll.u32 %s244, 4
          %s248 = int_to_ptr.hbm [resolvable:$true] %s247
          %253 = dma.vmem_to_hbm [thread:$0]  %s246, 512, %s248, %s233, 256, 256, 16
        $region43: #{tpu_custom_call.1} parent=23 // pred_fallthru
          _
      $region24: #{tpu_custom_call.1} parent=5 // pred_fallthru
        _
      %p254 = scmp.le.s32.totalorder 2, %s13
      // Predicated region
      $region44: #{tpu_custom_call.1} parent=5 // pred_check
        %p255 = pneg %p254
      $region45: #{tpu_custom_call.1} parent=5 // pred_check_branch
        %257 = sbr.rel (%p255) target = $region47
      $region46: #{tpu_custom_call.1} parent=5 // pred_region
        %s258 = ssub.s32 %s13, 2
        // Predicated region
        $region48: #{tpu_custom_call.1} parent=46 // pred_check
          %p259 = pneg %p84
        $region49: #{tpu_custom_call.1} parent=46 // pred_check_branch
          %261 = sbr.rel (%p259) target = $region51
        $region50: #{tpu_custom_call.1} parent=46 // pred_region
          %s262 = sand.u32 %s69, 1
          %s263 = scalar_lea.sflag [#allocation4], %s262
          %s264 = sand.u32 %s69, 1
          %s265 = smul.addr %s264, 32
          %s266 = scalar_lea.vmem [#allocation5], %s265
          %268 = dma.done %s263, 512
        $region51: #{tpu_custom_call.1} parent=46 // pred_fallthru
          _
      $region47: #{tpu_custom_call.1} parent=5 // pred_fallthru
        _
    $region6: #{tpu_custom_call.1} parent=1 // loop_footer
      %s17 = sadd.s32 1, %s13
    $region7: #{tpu_custom_call.1} parent=1 // loop_footer_branch
      %12 = sbr.rel target = $region3
    $region8: #{tpu_custom_call.1} parent=1 // loop_exit
      _
    %269 = vsyncpa [#allocation3], 1
    %s270 = scalar_lea.sflag [#allocation3], 1
    %271 = vsyncpa %s270, 1
    %272 = vsyncpa [#allocation4], 1
    %s273 = scalar_lea.sflag [#allocation4], 1
    %274 = vsyncpa %s273, 1

</llo_original>
